<compile_context>
chip_gen: v5e
topology: v5e:2x2
jax: 0.10.0
libtpu: 0.0.40
codegen_flags: <defaults>
</compile_context>

<pallas_src>
import functools

import jax
import jax.numpy as jnp
from jax.experimental import pallas as pl
from jax.experimental.pallas import tpu as pltpu

IN_DIM = 32
HID_DIM = 16
OUT_DIM = 4
OUT_PAD = 8           # output rows padded to a full 8-sublane vreg (rows 4..7 unused)
LANE = 128
SMALL_BATCH = 256     # below this, plain jnp beats pallas dispatch overhead


def _round_up(a, b):
    return ((a + b - 1) // b) * b


def _cdiv(a, b):
    return (a + b - 1) // b


# ----------------------------------------------------------------------------
# SubNet: fused Pallas kernel (natural-layout input, lane-dense transposed output)
# ----------------------------------------------------------------------------
def subnet_kernel(x_ref, w1_ref, b1_ref, w2_ref, b2_ref, oT_ref):
    x = x_ref[...]                                                 # (tb, 32), natural layout
    # h = W1 . x^T : contract the shared 32-dim of both operands; Mosaic handles
    # the operand transpose in VMEM — no wrapper-side transpose of x needed.
    h = jax.lax.dot_general(
        w1_ref[...], x,
        dimension_numbers=(((1,), (1,)), ((), ())),
        preferred_element_type=jnp.float32)                        # (16, tb)
    h = jnp.maximum(h + b1_ref[...], 0.0)                          # bias (16,1) lane-broadcast
    y = jnp.dot(w2_ref[...], h, preferred_element_type=jnp.float32)  # (8, tb)
    y = y + b2_ref[...]                                            # bias (8,1) lane-broadcast
    # sigmoid(y)*3 + 1  ==  1.5*tanh(0.5*y) + 2.5   (EUP tanh, no divide, no inf)
    oT_ref[...] = (1.5 * jnp.tanh(0.5 * y) + 2.5).astype(oT_ref.dtype)


def subnet_forward_T(x, w1, b1, w2, b2, *, block_b=4096):
    """SubNet forward. x: (B, 32) f32 -> transposed output (4, B) f32.

    Weights use PyTorch nn.Linear layout: w1 (16, 32), w2 (4, 16).
    Small batches (including MainModel's B=1 call) skip Pallas entirely.
    """
    B, in_dim = x.shape
    assert in_dim == IN_DIM

    if B <= SMALL_BATCH:
        # One tiny XLA fusion; pallas_call dispatch would dominate here.
        h = jnp.maximum(x @ w1.T + b1, 0.0)
        y = h @ w2.T + b2
        return (jax.nn.sigmoid(y) * 3.0 + 1.0).T

    # Batch tile: multiple of 128 lanes, big enough to amortize per-step
    # overhead, capped at ceil(B/2) lanes so there are always >=2 grid steps
    # (both v7x TensorCores engage under the "parallel" annotation).
    chunks = _cdiv(B, LANE)
    tb = max(LANE, min(_round_up(block_b, LANE), _cdiv(chunks, 2) * LANE))
    grid_n = _cdiv(B, tb)

    # Zero-pad w2/b2 to 8 output rows so the (8, tb) output block fills whole
    # 8-sublane vregs (unmasked stores).  Tiny one-time ops.
    w2p = jnp.zeros((OUT_PAD, HID_DIM), w2.dtype).at[:OUT_DIM].set(w2)
    b2p = jnp.zeros((OUT_PAD, 1), b2.dtype).at[:OUT_DIM, 0].set(b2)

    yT = pl.pallas_call(
        subnet_kernel,
        out_shape=jax.ShapeDtypeStruct((OUT_PAD, B), jnp.float32),
        grid=(grid_n,),
        in_specs=[
            pl.BlockSpec((tb, IN_DIM), lambda i: (i, 0)),          # x in natural layout
            pl.BlockSpec((HID_DIM, IN_DIM), lambda i: (0, 0)),     # weights stay VMEM-resident
            pl.BlockSpec((HID_DIM, 1), lambda i: (0, 0)),
            pl.BlockSpec((OUT_PAD, HID_DIM), lambda i: (0, 0)),
            pl.BlockSpec((OUT_PAD, 1), lambda i: (0, 0)),
        ],
        out_specs=pl.BlockSpec((OUT_PAD, tb), lambda i: (0, i)),   # lane-dense output block
        compiler_params=pltpu.CompilerParams(
            dimension_semantics=("parallel",) if grid_n > 1 else ("arbitrary",)),
    )(x, w1, b1.reshape(HID_DIM, 1), w2p, b2p)

    # Tail-block batch rows of x (if B % tb != 0) are unspecified padding, but
    # their columns never get stored past column B (masked tail store) and never
    # feed a reduction; padded output rows 4..7 are sliced off here.
    return yT[:OUT_DIM]


# ----------------------------------------------------------------------------
# PCTKernelLayer (fused grouped conv on XLA, around the Pallas SubNet)
# ----------------------------------------------------------------------------
@functools.lru_cache(maxsize=None)
def _pct_statics(image_size):
    S = image_size
    coords = jnp.arange(1, S + 1, dtype=jnp.float32)
    X, Y = jnp.meshgrid(coords, coords, indexing="ij")    # torch.meshgrid default is 'ij'
    c = (1.0 + S) / 2.0
    Xn = (X - c) / (c - 1.0)
    Yn = (Y - c) / (c - 1.0)
    R2 = Xn * Xn + Yn * Yn
    mask = (R2 <= 1.0).astype(jnp.float32)
    pad_lo = (S - 1) // 2
    pad_hi = (S - 1) - pad_lo          # matches PyTorch padding='same' for even kernels
    return mask, R2, pad_lo, pad_hi


def pct_layer(image, n_values, image_size):
    """PCTKernelLayer.forward for batch-1 (n, l) predictions (as MainModel uses it).

    Magnitude simplifies exactly: |mask*cos(pi*n*R^2) * mask*exp(-i*l*Theta)|
    == mask * |cos(pi*n*R^2)| because |exp(-i*l*Theta)| == 1 and mask in {0,1},
    so l drops out.  All branches are fused into ONE grouped conv (O=3*num, groups=3).
    """
    # TODO(synk): data-dependent full-image grouped 'same' conv2d stays on XLA's
    # convolution engine; no clean small Pallas formulation for it.
    S = image_size
    mask, R2, pad_lo, pad_hi = _pct_statics(S)
    num = n_values.shape[0]
    k2d = mask[None] * jnp.abs(jnp.cos(jnp.pi * n_values[:, None, None] * R2[None]))  # (num,S,S)
    # Grouped-conv weight (O = 3*num, I/g = 1, S, S): group g (image channel g)
    # produces output channels g*num + j, each convolved with kernel j.
    w = jnp.broadcast_to(k2d[None], (3, num, S, S)).reshape(3 * num, 1, S, S)
    out = jax.lax.conv_general_dilated(
        image, w, window_strides=(1, 1),
        padding=((pad_lo, pad_hi), (pad_lo, pad_hi)),
        dimension_numbers=("NCHW", "OIHW", "NCHW"),
        feature_group_count=3)
    return [out[:, j::num] for j in range(num)]


def main_model_forward(input_data, image, params, image_size):
    nlT = subnet_forward_T(input_data, *params)        # (4, B), consume rows directly
    # Rows 1 and 3 (l1, l2) drop out of the kernel magnitude; only n1, n2 matter.
    n_values = jnp.stack([nlT[0, 0], nlT[2, 0]])
    return pct_layer(image, n_values, image_size)


# ----------------------------------------------------------------------------
# Pure-JAX references + init
# ----------------------------------------------------------------------------
def init_params(key):
    """PyTorch nn.Linear layouts: w (out, in), b (out,)."""
    k1, k2, k3, k4 = jax.random.split(key, 4)
    bound1 = 1.0 / jnp.sqrt(jnp.float32(IN_DIM))
    bound2 = 1.0 / jnp.sqrt(jnp.float32(HID_DIM))
    w1 = jax.random.uniform(k1, (HID_DIM, IN_DIM), jnp.float32, -bound1, bound1)
    b1 = jax.random.uniform(k2, (HID_DIM,), jnp.float32, -bound1, bound1)
    w2 = jax.random.uniform(k3, (OUT_DIM, HID_DIM), jnp.float32, -bound2, bound2)
    b2 = jax.random.uniform(k4, (OUT_DIM,), jnp.float32, -bound2, bound2)
    return w1, b1, w2, b2


def reference_subnet(x, w1, b1, w2, b2):
    h = jnp.maximum(x @ w1.T + b1, 0.0)
    y = h @ w2.T + b2
    return jax.nn.sigmoid(y) * 3.0 + 1.0


def reference_pct_layer(image, list_nl, image_size):
    """Literal (complex-phase, per-branch) transcription of the PyTorch layer."""
    S = image_size
    coords = jnp.linspace(1.0, float(S), S)
    X, Y = jnp.meshgrid(coords, coords, indexing="ij")
    c = (1.0 + S) / 2.0
    X = (X - c) / (c - 1.0)
    Y = (Y - c) / (c - 1.0)
    R = jnp.sqrt(X ** 2 + Y ** 2)
    Theta = jnp.arctan2(Y, X)
    mask = (R <= 1.0).astype(jnp.float32)
    pad_lo = (S - 1) // 2
    pad_hi = (S - 1) - pad_lo
    outs = []
    for n, l in list_nl:
        amplitude = mask * jnp.cos(jnp.pi * n.reshape(()) * R ** 2)
        phase = mask * jnp.exp(-1j * l.reshape(()) * Theta)
        magnitude = jnp.abs(amplitude * phase).astype(jnp.float32)
        kern = jnp.broadcast_to(magnitude[None, None], (3, 1, S, S))
        outs.append(jax.lax.conv_general_dilated(
            image, kern, window_strides=(1, 1),
            padding=((pad_lo, pad_hi), (pad_lo, pad_hi)),
            dimension_numbers=("NCHW", "OIHW", "NCHW"),
            feature_group_count=3))
    return outs


def reference_main_model(input_data, image, params, image_size):
    nl = reference_subnet(input_data, *params)
    n1, l1, n2, l2 = (nl[:, i:i + 1] for i in range(OUT_DIM))
    return reference_pct_layer(image, [(n1, l1), (n2, l2)], image_size)


if __name__ == "__main__":
    key = jax.random.PRNGKey(0)
    k_in, k_img, k_par, k_big = jax.random.split(key, 4)

    IMAGE_SIZE = 16
    input_data = jax.random.normal(k_in, (1, IN_DIM), jnp.float32)
    image = jax.random.normal(k_img, (1, 3, IMAGE_SIZE, IMAGE_SIZE), jnp.float32)
    params = init_params(k_par)

    # SubNet Pallas kernel correctness: multi-step grid + tail block
    # (B=300, tile=128 -> grid 3) and the default tile choice (tile=256 -> grid 2).
    xb = jax.random.normal(k_big, (300, IN_DIM), jnp.float32)
    ref_bT = reference_subnet(xb, *params).T
    for bb in (128, 4096):
        out_bT = jax.block_until_ready(subnet_forward_T(xb, *params, block_b=bb))
        assert out_bT.shape == (OUT_DIM, 300)
        assert jnp.allclose(out_bT, ref_bT, atol=1e-5, rtol=1e-5)

    # Full MainModel forward (SubNet small-batch path + one fused grouped conv).
    main_fwd = jax.jit(main_model_forward, static_argnums=(3,))
    responses = jax.block_until_ready(main_fwd(input_data, image, params, IMAGE_SIZE))

    # End-to-end check against the literal pure-JAX reference pipeline.
    ref_resp = reference_main_model(input_data, image, params, IMAGE_SIZE)
    assert len(responses) == 2
    for got, want in zip(responses, ref_resp):
        assert got.shape == (1, 3, IMAGE_SIZE, IMAGE_SIZE)
        assert jnp.allclose(got, want, atol=1e-3, rtol=1e-3)

    print("KERNEL_OK")
</pallas_src>

<mosaic_0001>
module attributes {stable_mosaic.version = 11 : i64} {
  func.func @subnet_kernel(%arg0: i32, %arg1: memref<128x32xf32, #tpu.memory_space<vmem>>, %arg2: memref<16x32xf32, #tpu.memory_space<vmem>>, %arg3: memref<16x1xf32, #tpu.memory_space<vmem>>, %arg4: memref<8x16xf32, #tpu.memory_space<vmem>>, %arg5: memref<8x1xf32, #tpu.memory_space<vmem>>, %arg6: memref<8x128xf32, #tpu.memory_space<vmem>>) attributes {dimension_semantics = [#tpu.dimension_semantics<parallel>], iteration_bounds = array<i64: 3>, scalar_prefetch = 0 : i64, scratch_operands = 0 : i64, tpu.core_type = #tpu.core_type<tc>, window_params = [{transform_indices = @transform_0, window_bounds = array<i64: 128, 32>}, {pipeline_mode = #tpu.pipeline_mode<synchronous>, transform_indices = @transform_1, window_bounds = array<i64: 16, 32>}, {pipeline_mode = #tpu.pipeline_mode<synchronous>, transform_indices = @transform_2, window_bounds = array<i64: 16, 1>}, {pipeline_mode = #tpu.pipeline_mode<synchronous>, transform_indices = @transform_3, window_bounds = array<i64: 8, 16>}, {pipeline_mode = #tpu.pipeline_mode<synchronous>, transform_indices = @transform_4, window_bounds = array<i64: 8, 1>}, {transform_indices = @transform_5, window_bounds = array<i64: 8, 128>}]} {
    %c0 = arith.constant 0 : index
    %c0_0 = arith.constant 0 : index
    %0 = vector.load %arg1[%c0, %c0_0] : memref<128x32xf32, #tpu.memory_space<vmem>>, vector<128x32xf32>
    %c0_1 = arith.constant 0 : index
    %c0_2 = arith.constant 0 : index
    %1 = vector.load %arg2[%c0_1, %c0_2] : memref<16x32xf32, #tpu.memory_space<vmem>>, vector<16x32xf32>
    %cst = arith.constant dense<0.000000e+00> : vector<16x128xf32>
    %2 = tpu.matmul %1, %0, %cst {dimension_numbers = #tpu.dot_dimension_numbers<[1], [1], [0], [0], [0, 0, 1, 0], [], []>} : vector<16x32xf32>, vector<128x32xf32>, vector<16x128xf32> -> vector<16x128xf32>
    %c0_3 = arith.constant 0 : index
    %c0_4 = arith.constant 0 : index
    %3 = vector.load %arg3[%c0_3, %c0_4] : memref<16x1xf32, #tpu.memory_space<vmem>>, vector<16x1xf32>
    %4 = vector.broadcast %3 : vector<16x1xf32> to vector<16x128xf32>
    %5 = arith.addf %2, %4 : vector<16x128xf32>
    %cst_5 = arith.constant 0.000000e+00 : f32
    %6 = vector.broadcast %cst_5 : f32 to vector<16x128xf32>
    %7 = arith.maximumf %5, %6 : vector<16x128xf32>
    %c0_6 = arith.constant 0 : index
    %c0_7 = arith.constant 0 : index
    %8 = vector.load %arg4[%c0_6, %c0_7] : memref<8x16xf32, #tpu.memory_space<vmem>>, vector<8x16xf32>
    %cst_8 = arith.constant dense<0.000000e+00> : vector<8x128xf32>
    %9 = tpu.matmul %8, %7, %cst_8 {dimension_numbers = #tpu.dot_dimension_numbers<[1], [0], [0], [1], [0, 0, 1, 1], [], []>} : vector<8x16xf32>, vector<16x128xf32>, vector<8x128xf32> -> vector<8x128xf32>
    %c0_9 = arith.constant 0 : index
    %c0_10 = arith.constant 0 : index
    %10 = vector.load %arg5[%c0_9, %c0_10] : memref<8x1xf32, #tpu.memory_space<vmem>>, vector<8x1xf32>
    %11 = vector.broadcast %10 : vector<8x1xf32> to vector<8x128xf32>
    %12 = arith.addf %9, %11 : vector<8x128xf32>
    %cst_11 = arith.constant 5.000000e-01 : f32
    %13 = vector.broadcast %cst_11 : f32 to vector<8x128xf32>
    %14 = arith.mulf %13, %12 : vector<8x128xf32>
    %15 = math.tanh %14 : vector<8x128xf32>
    %cst_12 = arith.constant 1.500000e+00 : f32
    %16 = vector.broadcast %cst_12 : f32 to vector<8x128xf32>
    %17 = arith.mulf %16, %15 : vector<8x128xf32>
    %cst_13 = arith.constant 2.500000e+00 : f32
    %18 = vector.broadcast %cst_13 : f32 to vector<8x128xf32>
    %19 = arith.addf %17, %18 : vector<8x128xf32>
    %c0_14 = arith.constant 0 : index
    %c0_15 = arith.constant 0 : index
    %20 = vector.load %arg6[%c0_14, %c0_15] : memref<8x128xf32, #tpu.memory_space<vmem>>, vector<8x128xf32>
    tpu.vector_store %arg6[%c0_14, %c0_15], %19 {strides = array<i32>} : memref<8x128xf32, #tpu.memory_space<vmem>>, vector<8x128xf32>,
    return
  }
  func.func @transform_0(%arg0: i32) -> (i32, i32) {
    %c0_i32 = arith.constant 0 : i32
    %c0_i32_0 = arith.constant 0 : i32
    return %arg0, %c0_i32 : i32, i32
  }
  func.func @transform_1(%arg0: i32) -> (i32, i32) {
    %c0_i32 = arith.constant 0 : i32
    %c0_i32_0 = arith.constant 0 : i32
    %c0_i32_1 = arith.constant 0 : i32
    return %c0_i32, %c0_i32_0 : i32, i32
  }
  func.func @transform_2(%arg0: i32) -> (i32, i32) {
    %c0_i32 = arith.constant 0 : i32
    %c0_i32_0 = arith.constant 0 : i32
    %c0_i32_1 = arith.constant 0 : i32
    return %c0_i32, %c0_i32_0 : i32, i32
  }
  func.func @transform_3(%arg0: i32) -> (i32, i32) {
    %c0_i32 = arith.constant 0 : i32
    %c0_i32_0 = arith.constant 0 : i32
    %c0_i32_1 = arith.constant 0 : i32
    return %c0_i32, %c0_i32_0 : i32, i32
  }
  func.func @transform_4(%arg0: i32) -> (i32, i32) {
    %c0_i32 = arith.constant 0 : i32
    %c0_i32_0 = arith.constant 0 : i32
    %c0_i32_1 = arith.constant 0 : i32
    return %c0_i32, %c0_i32_0 : i32, i32
  }
  func.func @transform_5(%arg0: i32) -> (i32, i32) {
    %c0_i32 = arith.constant 0 : i32
    %c0_i32_0 = arith.constant 0 : i32
    return %c0_i32, %arg0 : i32, i32
  }
}

</mosaic_0001>

<llo_original>
// kernel: tpu_custom_call.1
$region0: #{tpu_custom_call.1}
  #allocation0 [shape = 'u32[]', space=smem, size = 0x4, offset = 0x4, fixed_abs, tag = 'smem constant byte address 0x4 - core index']
  #allocation1 [shape = 'u32[72,128]{1,0:T(1,128)}', space=vmem, size = 0x9000, scoped, tag = 'internal scratch']
  %s0 = inlined_call_operand.vmem [shape: f32[300,32], index: 0, kind: input, shape index: {}]
  %s1 = inlined_call_operand.vmem [shape: f32[16,32], index: 1, kind: input, shape index: {}]
  %s2 = inlined_call_operand.vmem [shape: f32[16,1], index: 2, kind: input, shape index: {}]
  %s3 = inlined_call_operand.vmem [shape: f32[8,16], index: 3, kind: input, shape index: {}]
  %s4 = inlined_call_operand.vmem [shape: f32[8,1], index: 4, kind: input, shape index: {}]
  %s5 = inlined_call_operand.hbm [shape: f32[8,300], index: 5, kind: output, shape index: {}]
  %s6 = sld [smem:[#allocation0]]
  $region53: #{tpu_custom_call.1} parent=0
    _
  %s8 = ssub.s32 1, %s6
  %s9 = scalar_select 0, %s8, %s6
  $region1: #{tpu_custom_call.1} parent=0
    #allocation2 [shape = 'u8[8192]{0}', space=vmem, size = 0x2000, scoped, tag = 'output window, operand 0']
    #allocation3 [shape = 's32[2]{0}', space=sflag, size = 0x8, scoped, tag = 'scoped memory for tpu_custom_call.1']
    %10 = vsyncpa [#allocation3], 0
    %s11 = scalar_lea.sflag [#allocation3], 1
    %12 = vsyncpa %s11, 0
    loop: start=0, step=1, limit=5
    $region2: #{tpu_custom_call.1} parent=1 // loop_pre_header
      _
    $region3: #{tpu_custom_call.1} parent=1 // loop_header
      %s14 = sphi 0, %s18
      %p15 = scmp.ge.s32.totalorder %s14, 5
      %s24 = sphi 0, %s26
      %s27 = sphi 0, %s24
      %s28 = sphi 0, %s27
      %s44 = sphi 0, %s28
      %s48 = sphi 0, %s48
      %s50 = sphi 0, %s48
      %s51 = sphi 0, %s50
      %s65 = sphi 0, %s51
      %s69 = sphi 0, %s69
      %s71 = sphi 0, %s69
      %s72 = sphi 0, %s71
      %s86 = sphi 0, %s72
      %s90 = sphi 0, %s90
      %s92 = sphi 0, %s90
      %s93 = sphi 0, %s92
      %s107 = sphi 0, %s93
      %s111 = sphi 0, %s111
      %s113 = sphi 0, %s111
      %s114 = sphi 0, %s113
      %s128 = sphi 0, %s114
      %s134 = sphi 0, %s136
      %s137 = sphi 0, %s134
      %s138 = sphi 0, %s137
      %s154 = sphi 0, %s138
    $region4: #{tpu_custom_call.1} parent=1 // loop_header_branch
      %17 = sbr.rel (%p15) target = $region8
    $region5: #{tpu_custom_call.1} parent=1 // loop_body
      %s19 = ssub.s32 %s14, 1
      %s20 = ssub.s32 %s14, 2
      %s21 = sadd.s32 %s14, 1
      %s22 = ssub.s32 %s14, %s21
      %p23 = scmp.eq.s32.totalorder %s22, 0
      %s25 = sadd.s32 %s24, 1
      %s26 = scalar_select %p23, %s24, %s25
      %p29 = pneg %p23
      %p30 = scmp.eq.s32.totalorder %s14, 2
      %p31 = por %p29, %p30
      %p32 = scmp.ne.s32.totalorder %s24, %s27
      %p33 = scmp.eq.s32.totalorder %s14, 0
      %p34 = por %p32, %p33
      %p35 = scmp.ne.s32.totalorder %s24, %s27
      %p36 = scmp.eq.s32.totalorder %s19, 2
      %p37 = por %p35, %p36
      %p38 = scmp.ne.s32.totalorder %s27, %s28
      %p39 = scmp.eq.s32.totalorder %s19, 0
      %p40 = por %p38, %p39
      %p41 = scmp.ne.s32.totalorder %s27, %s28
      %p42 = scmp.eq.s32.totalorder %s20, 2
      %p43 = por %p41, %p42
      %p45 = scmp.ne.s32.totalorder %s28, %s44
      %p46 = scmp.eq.s32.totalorder %s20, 0
      %p47 = por %p45, %p46
      %s49 = sadd.s32 %s48, 1
      %p52 = scmp.eq.s32.totalorder %s14, 2
      %p53 = scmp.ne.s32.totalorder %s48, %s50
      %p54 = scmp.eq.s32.totalorder %s14, 0
      %p55 = por %p53, %p54
      %p56 = scmp.ne.s32.totalorder %s48, %s50
      %p57 = scmp.eq.s32.totalorder %s19, 2
      %p58 = por %p56, %p57
      %p59 = scmp.ne.s32.totalorder %s50, %s51
      %p60 = scmp.eq.s32.totalorder %s19, 0
      %p61 = por %p59, %p60
      %p62 = scmp.ne.s32.totalorder %s50, %s51
      %p63 = scmp.eq.s32.totalorder %s20, 2
      %p64 = por %p62, %p63
      %p66 = scmp.ne.s32.totalorder %s51, %s65
      %p67 = scmp.eq.s32.totalorder %s20, 0
      %p68 = por %p66, %p67
      %s70 = sadd.s32 %s69, 1
      %p73 = scmp.eq.s32.totalorder %s14, 2
      %p74 = scmp.ne.s32.totalorder %s69, %s71
      %p75 = scmp.eq.s32.totalorder %s14, 0
      %p76 = por %p74, %p75
      %p77 = scmp.ne.s32.totalorder %s69, %s71
      %p78 = scmp.eq.s32.totalorder %s19, 2
      %p79 = por %p77, %p78
      %p80 = scmp.ne.s32.totalorder %s71, %s72
      %p81 = scmp.eq.s32.totalorder %s19, 0
      %p82 = por %p80, %p81
      %p83 = scmp.ne.s32.totalorder %s71, %s72
      %p84 = scmp.eq.s32.totalorder %s20, 2
      %p85 = por %p83, %p84
      %p87 = scmp.ne.s32.totalorder %s72, %s86
      %p88 = scmp.eq.s32.totalorder %s20, 0
      %p89 = por %p87, %p88
      %s91 = sadd.s32 %s90, 1
      %p94 = scmp.eq.s32.totalorder %s14, 2
      %p95 = scmp.ne.s32.totalorder %s90, %s92
      %p96 = scmp.eq.s32.totalorder %s14, 0
      %p97 = por %p95, %p96
      %p98 = scmp.ne.s32.totalorder %s90, %s92
      %p99 = scmp.eq.s32.totalorder %s19, 2
      %p100 = por %p98, %p99
      %p101 = scmp.ne.s32.totalorder %s92, %s93
      %p102 = scmp.eq.s32.totalorder %s19, 0
      %p103 = por %p101, %p102
      %p104 = scmp.ne.s32.totalorder %s92, %s93
      %p105 = scmp.eq.s32.totalorder %s20, 2
      %p106 = por %p104, %p105
      %p108 = scmp.ne.s32.totalorder %s93, %s107
      %p109 = scmp.eq.s32.totalorder %s20, 0
      %p110 = por %p108, %p109
      %s112 = sadd.s32 %s111, 1
      %p115 = scmp.eq.s32.totalorder %s14, 2
      %p116 = scmp.ne.s32.totalorder %s111, %s113
      %p117 = scmp.eq.s32.totalorder %s14, 0
      %p118 = por %p116, %p117
      %p119 = scmp.ne.s32.totalorder %s111, %s113
      %p120 = scmp.eq.s32.totalorder %s19, 2
      %p121 = por %p119, %p120
      %p122 = scmp.ne.s32.totalorder %s113, %s114
      %p123 = scmp.eq.s32.totalorder %s19, 0
      %p124 = por %p122, %p123
      %p125 = scmp.ne.s32.totalorder %s113, %s114
      %p126 = scmp.eq.s32.totalorder %s20, 2
      %p127 = por %p125, %p126
      %p129 = scmp.ne.s32.totalorder %s114, %s128
      %p130 = scmp.eq.s32.totalorder %s20, 0
      %p131 = por %p129, %p130
      %s132 = ssub.s32 %s14, %s21
      %p133 = scmp.eq.s32.totalorder %s132, 0
      %s135 = sadd.s32 %s134, 1
      %s136 = scalar_select %p133, %s134, %s135
      %p139 = pneg %p133
      %p140 = scmp.eq.s32.totalorder %s14, 2
      %p141 = por %p139, %p140
      %p142 = scmp.ne.s32.totalorder %s134, %s137
      %p143 = scmp.eq.s32.totalorder %s14, 0
      %p144 = por %p142, %p143
      %p145 = scmp.ne.s32.totalorder %s134, %s137
      %p146 = scmp.eq.s32.totalorder %s19, 2
      %p147 = por %p145, %p146
      %p148 = scmp.ne.s32.totalorder %s137, %s138
      %p149 = scmp.eq.s32.totalorder %s19, 0
      %p150 = por %p148, %p149
      %p151 = scmp.ne.s32.totalorder %s137, %s138
      %p152 = scmp.eq.s32.totalorder %s20, 2
      %p153 = por %p151, %p152
      %p155 = scmp.ne.s32.totalorder %s138, %s154
      %p156 = scmp.eq.s32.totalorder %s20, 0
      %p157 = por %p155, %p156
      %p158 = scmp.le.s32.totalorder 1, %s14
      %p159 = scmp.lt.s32.totalorder %s14, 4
      %p160 = pnand %p158, %p159
      %p161 = pneg %p160
      // Predicated region
      $region9: #{tpu_custom_call.1} parent=5 // pred_check
        _
      $region10: #{tpu_custom_call.1} parent=5 // pred_check_branch
        %163 = sbr.rel (%p160) target = $region12
      $region11: #{tpu_custom_call.1} parent=5 // pred_region
        %s164 = ssub.s32 %s14, 1
        // Predicated region
        $region13: #{tpu_custom_call.1} parent=11 // pred_check
          %p165 = pneg %p61
        $region14: #{tpu_custom_call.1} parent=11 // pred_check_branch
          %167 = sbr.rel (%p165) target = $region16
        $region15: #{tpu_custom_call.1} parent=11 // pred_region
          _
        $region16: #{tpu_custom_call.1} parent=11 // pred_fallthru
          _
        // Predicated region
        $region17: #{tpu_custom_call.1} parent=11 // pred_check
          %p168 = pneg %p82
        $region18: #{tpu_custom_call.1} parent=11 // pred_check_branch
          %170 = sbr.rel (%p168) target = $region20
        $region19: #{tpu_custom_call.1} parent=11 // pred_region
          _
        $region20: #{tpu_custom_call.1} parent=11 // pred_fallthru
          _
        // Predicated region
        $region21: #{tpu_custom_call.1} parent=11 // pred_check
          %p171 = pneg %p103
        $region22: #{tpu_custom_call.1} parent=11 // pred_check_branch
          %173 = sbr.rel (%p171) target = $region24
        $region23: #{tpu_custom_call.1} parent=11 // pred_region
          _
        $region24: #{tpu_custom_call.1} parent=11 // pred_fallthru
          _
        // Predicated region
        $region25: #{tpu_custom_call.1} parent=11 // pred_check
          %p174 = pneg %p124
        $region26: #{tpu_custom_call.1} parent=11 // pred_check_branch
          %176 = sbr.rel (%p174) target = $region28
        $region27: #{tpu_custom_call.1} parent=11 // pred_region
          _
        $region28: #{tpu_custom_call.1} parent=11 // pred_fallthru
          _
      $region12: #{tpu_custom_call.1} parent=5 // pred_fallthru
        _
      %p177 = scmp.lt.s32.totalorder %s14, 3
      // Predicated region
      $region29: #{tpu_custom_call.1} parent=5 // pred_check
        %p178 = pneg %p177
      $region30: #{tpu_custom_call.1} parent=5 // pred_check_branch
        %180 = sbr.rel (%p178) target = $region32
      $region31: #{tpu_custom_call.1} parent=5 // pred_region
        // Predicated region
        $region33: #{tpu_custom_call.1} parent=31 // pred_check
          %p181 = pneg %p34
        $region34: #{tpu_custom_call.1} parent=31 // pred_check_branch
          %183 = sbr.rel (%p181) target = $region36
        $region35: #{tpu_custom_call.1} parent=31 // pred_region
          %s184 = smul.u32 16, %s14
          %s185 = ssub.s32 38, %s184
          %p186 = scmp.lt.s32.totalorder %s185, 16
          %s187 = scalar_select %p186, %s185, 16
          %s188 = smul.u32 8, %s187
          %p189 = scmp.lt.s32.totalorder %s184, 37
          %s190 = scalar_select %p189, %s184, 37
          %s191 = smul.addr %s190, 8
          %s192 = scalar_lea.vmem %s0, %s191
          %s193 = smul.u32 16, %s14
          %s194 = ssub.s32 38, %s193
          %p195 = scmp.lt.s32.totalorder %s194, 16
          %s196 = scalar_select %p195, %s194, 16
          %s197 = smul.u32 8, %s196
        $region36: #{tpu_custom_call.1} parent=31 // pred_fallthru
          _
      $region32: #{tpu_custom_call.1} parent=5 // pred_fallthru
        _
      %p198 = scmp.le.s32.totalorder 1, %s14
      %p199 = scmp.lt.s32.totalorder %s14, 4
      %p200 = pnand %p198, %p199
      %p201 = pneg %p200
      // Predicated region
      $region37: #{tpu_custom_call.1} parent=5 // pred_check
        _
      $region38: #{tpu_custom_call.1} parent=5 // pred_check_branch
        %203 = sbr.rel (%p200) target = $region40
      $region39: #{tpu_custom_call.1} parent=5 // pred_region
        %s204 = ssub.s32 %s14, 1
        %s205 = smul.u32 16, %s19
        %s206 = ssub.s32 38, %s205
        %p207 = scmp.lt.s32.totalorder %s206, 16
        %s208 = scalar_select %p207, %s206, 16
        %s209 = smul.u32 8, %s208
        %p210 = scmp.lt.s32.totalorder %s205, 37
        %s211 = scalar_select %p210, %s205, 37
        %s212 = smul.addr %s211, 8
        %s213 = scalar_lea.vmem %s0, %s212
        %p214 = pneg %p40
        %p215 = pneg %p37
        %p216 = pneg %p61
        %p217 = pneg %p58
        %p218 = pneg %p82
        %p219 = pneg %p79
        %p220 = pneg %p103
        %p221 = pneg %p100
        %p222 = pneg %p124
        %p223 = pneg %p121
        %p224 = pneg %p150
        %p225 = pneg %p147
        %s226 = sand.u32 %s137, 1
        %s227 = scalar_lea.sflag [#allocation3], %s226
        %s228 = sand.u32 %s137, 1
        %s229 = smul.addr %s228, 8
        %s230 = scalar_lea.vmem [#allocation2], %s229
        %s231 = smul.u32 16, %s19
        %s232 = ssub.s32 38, %s231
        %p233 = scmp.lt.s32.totalorder %s232, 16
        %s234 = scalar_select %p233, %s232, 16
        %s235 = smul.u32 8, %s234
        %p236 = scmp.lt.s32.totalorder %s231, 37
        %s237 = scalar_select %p236, %s231, 37
        %s238 = smul.addr %s237, 8
        %s239 = scalar_lea.vmem %s0, %s238
        %s240 = smul.u32 16, %s19
        %s241 = ssub.s32 38, %s240
        %p242 = scmp.lt.s32.totalorder %s241, 16
        %s243 = scalar_select %p242, %s241, 16
        %s244 = smul.u32 8, %s243
        %v245 = vld [vmem:[%s239] sm:$0xff]
        %v246 = vld [vmem:[%s239 + $0x8] sm:$0xff]
        %v247 = vld [vmem:[%s239 + $0x10] sm:$0xff]
        %v248 = vld [vmem:[%s239 + $0x18] sm:$0xff]
        %v249 = vld [vmem:[%s239 + $0x20] sm:$0xff]
        %v250 = vld [vmem:[%s239 + $0x28] sm:$0xff]
        %v251 = vld [vmem:[%s239 + $0x30] sm:$0xff]
        %v252 = vld [vmem:[%s239 + $0x38] sm:$0xff]
        %v253 = vld [vmem:[%s239 + $0x40] sm:$0xff]
        %v254 = vld [vmem:[%s239 + $0x48] sm:$0xff]
        %v255 = vld [vmem:[%s239 + $0x50] sm:$0xff]
        %v256 = vld [vmem:[%s239 + $0x58] sm:$0xff]
        %v257 = vld [vmem:[%s239 + $0x60] sm:$0xff]
        %v258 = vld [vmem:[%s239 + $0x68] sm:$0xff]
        %v259 = vld [vmem:[%s239 + $0x70] sm:$0xff]
        %v260 = vld [vmem:[%s239 + $0x78] sm:$0xff]
        %v261 = vld [vmem:[%s1] sm:$0xff]
        %v262 = vld [vmem:[%s1 + $0x8] sm:$0xff]
        %v263 = vld [vmem:[%s2] sm:$0xff]
        %v264 = vld [vmem:[%s2 + $0x8] sm:$0xff]
        %266 = vset.pattern.permute.xlu0 0
        %267 = vperm.xlu0 %266, %v263
        %v268 = vpop.permute.xlu0 %267
        %271 = vset.pattern.permute.xlu0 0
        %272 = vperm.xlu0 %271, %v264
        %v273 = vpop.permute.xlu0 %272
        %vm275 = vcmask 261120
        %v277 = vsel %vm275, %v261, 0
        %v280 = vsel %vm275, %v262, 0
        %v283 = vsel %vm275, %v245, 0
        %v286 = vsel %vm275, %v246, 0
        %v289 = vsel %vm275, %v247, 0
        %v292 = vsel %vm275, %v248, 0
        %v295 = vsel %vm275, %v249, 0
        %v298 = vsel %vm275, %v250, 0
        %v301 = vsel %vm275, %v251, 0
        %v304 = vsel %vm275, %v252, 0
        %v307 = vsel %vm275, %v253, 0
        %v310 = vsel %vm275, %v254, 0
        %v313 = vsel %vm275, %v255, 0
        %v316 = vsel %vm275, %v256, 0
        %v319 = vsel %vm275, %v257, 0
        %v322 = vsel %vm275, %v258, 0
        %v325 = vsel %vm275, %v259, 0
        %v328 = vsel %vm275, %v260, 0
        %330 = vmatpush.xpose.msra.mxu0 %v328
        %331 = vmatpush.xpose.msra.mxu0 %v325
        %332 = vmatpush.xpose.msra.mxu0 %v322
        %333 = vmatpush.xpose.msra.mxu0 %v319
        %334 = vmatpush.xpose.msra.mxu0 %v316
        %335 = vmatpush.xpose.msra.mxu0 %v313
        %336 = vmatpush.xpose.msra.mxu0 %v310
        %337 = vmatpush.xpose.msra.mxu0 %v307
        %338 = vmatpush.xpose.msra.mxu0 %v304
        %339 = vmatpush.xpose.msra.mxu0 %v301
        %340 = vmatpush.xpose.msra.mxu0 %v298
        %341 = vmatpush.xpose.msra.mxu0 %v295
        %342 = vmatpush.xpose.msra.mxu0 %v292
        %343 = vmatpush.xpose.msra.mxu0 %v289
        %344 = vmatpush.xpose.msra.mxu0 %v286
        %345 = vmatpush.xpose.msra.mxu0 %v283
        %346 = vmatmul.f32.gmra.mxu0 %v277
        %v347 = vpop.f32.mrf.mxu0
        %v348 = vadd.f32 %v268, %v347
        %349 = vmatmul.f32.gmra.mxu0 %v280
        %v350 = vpop.f32.mrf.mxu0
        %v351 = vadd.f32 %v273, %v350
        %352 = vdwg.mxu0
        %v353 = vmax.f32 %v348, 0.0
        %v354 = vmax.f32 %v351, 0.0
        %v355 = vld [vmem:[%s3] sm:$0xff]
        %v356 = vld [vmem:[%s4] sm:$0xff]
        %358 = vset.pattern.permute.xlu0 0
        %359 = vperm.xlu0 %358, %v356
        %v360 = vpop.permute.xlu0 %359
        %vm362 = vcmask 130048
        %v364 = vsel %vm362, %v355, 0
        %366 = vmatpush.msra.mxu0 0.0
        %367 = vmatpush.msra.mxu0 0.0
        %368 = vmatpush.msra.mxu0 0.0
        %369 = vmatpush.msra.mxu0 0.0
        %370 = vmatpush.msra.mxu0 0.0
        %371 = vmatpush.msra.mxu0 0.0
        %372 = vmatpush.msra.mxu0 0.0
        %373 = vmatpush.msra.mxu0 0.0
        %374 = vmatpush.msra.mxu0 0.0
        %375 = vmatpush.msra.mxu0 0.0
        %376 = vmatpush.msra.mxu0 0.0
        %377 = vmatpush.msra.mxu0 0.0
        %378 = vmatpush.msra.mxu0 0.0
        %379 = vmatpush.msra.mxu0 0.0
        %380 = vmatpush.msra.mxu0 %v354
        %381 = vmatpush.msra.mxu0 %v353
        %382 = vmatmul.f32.gmra.mxu0 %v364
        %v383 = vpop.f32.mrf.mxu0
        %v384 = vadd.f32 %v360, %v383
        %385 = vdwg.mxu0
        %v386 = vmul.f32 %v384, 0.5
        %v387 = vtanh.pop %v386
        %v388 = vmul.f32 %v387, 1.5
        %v389 = vadd.f32 %v388, 2.5
        %390 = vst [vmem:[%s230] sm:$0xff] %v389
        %s391 = sand.u32 %s137, 1
        %s392 = scalar_lea.sflag [#allocation3], %s391
        %s393 = sand.u32 %s137, 1
        %s394 = smul.addr %s393, 8
        %s395 = scalar_lea.vmem [#allocation2], %s394
        // Predicated region
        $region41: #{tpu_custom_call.1} parent=39 // pred_check
          %p396 = pneg %p147
        $region42: #{tpu_custom_call.1} parent=39 // pred_check_branch
          %398 = sbr.rel (%p396) target = $region44
        $region43: #{tpu_custom_call.1} parent=39 // pred_region
          %400 = vsyncadd %s392, 0
          %s401 = smul.addr %s19, 8
          %s402 = scalar_lea.hbm %s5, %s401
          %s404 = sshll.u32 %s395, 4
          %s405 = int_to_ptr.vmem [resolvable:$true] %s404
          %s406 = sshll.u32 %s402, 4
          %s407 = int_to_ptr.hbm [resolvable:$true] %s406
          %409 = dma.vmem_to_hbm [thread:$0]  %s405, 128, %s407, %s392
        $region44: #{tpu_custom_call.1} parent=39 // pred_fallthru
          _
      $region40: #{tpu_custom_call.1} parent=5 // pred_fallthru
        _
      %p410 = scmp.le.s32.totalorder 2, %s14
      // Predicated region
      $region45: #{tpu_custom_call.1} parent=5 // pred_check
        %p411 = pneg %p410
      $region46: #{tpu_custom_call.1} parent=5 // pred_check_branch
        %413 = sbr.rel (%p411) target = $region48
      $region47: #{tpu_custom_call.1} parent=5 // pred_region
        %s414 = ssub.s32 %s14, 2
        // Predicated region
        $region49: #{tpu_custom_call.1} parent=47 // pred_check
          %p415 = pneg %p153
        $region50: #{tpu_custom_call.1} parent=47 // pred_check_branch
          %417 = sbr.rel (%p415) target = $region52
        $region51: #{tpu_custom_call.1} parent=47 // pred_region
          %s418 = sand.u32 %s138, 1
          %s419 = scalar_lea.sflag [#allocation3], %s418
          %s420 = sand.u32 %s138, 1
          %s421 = smul.addr %s420, 8
          %s422 = scalar_lea.vmem [#allocation2], %s421
          %424 = dma.done %s419, 128
        $region52: #{tpu_custom_call.1} parent=47 // pred_fallthru
          _
      $region48: #{tpu_custom_call.1} parent=5 // pred_fallthru
        _
    $region6: #{tpu_custom_call.1} parent=1 // loop_footer
      %s18 = sadd.s32 1, %s14
    $region7: #{tpu_custom_call.1} parent=1 // loop_footer_branch
      %13 = sbr.rel target = $region3
    $region8: #{tpu_custom_call.1} parent=1 // loop_exit
      _
    %425 = vsyncpa [#allocation3], 1
    %s426 = scalar_lea.sflag [#allocation3], 1
    %427 = vsyncpa %s426, 1

</llo_original>
